<compile_context>
chip_gen: v5e
topology: v5e:2x2
jax: 0.10.0
libtpu: 0.0.40
codegen_flags: <defaults>
</compile_context>

<pallas_src>
import functools

import jax
import jax.numpy as jnp
from jax.experimental import pallas as pl
from jax.experimental.pallas import tpu as pltpu


def _attention_kernel(q_ref, st_ref, m_ref, wq_ref, wk_ref, c_ref,
                      w_out_ref, attn_out_ref, *, s_real):
    Bb, S_pad, V = st_ref.shape

    # Packed small parameters (one DMA): rows = [bq, bk, We_q, We_k, be].
    bq = c_ref[0:1, :]
    bk = c_ref[1:2, :]
    weq = c_ref[2:3, :]
    wek = c_ref[3:4, :]
    be = c_ref[4:5, 0:1]

    # proj_q + ReLU.
    q = jnp.dot(q_ref[...], wq_ref[...], preferred_element_type=jnp.float32) + bq
    q = jnp.maximum(q, 0.0)                                              # (Bb, I)

    # proj_k + ReLU, with (Bb, S_pad) flattened into the MXU M dimension.
    # S_pad is a multiple of 8 (wrapper pads), so this reshape is a free
    # sublane merge, not a relayout copy.
    st = st_ref[...]                                                     # (Bb, S_pad, V)
    k = jnp.dot(st.reshape(Bb * S_pad, V), wk_ref[...],
                preferred_element_type=jnp.float32) + bk
    k = jnp.maximum(k, 0.0)                                              # (Bb*S_pad, I)

    # proj_e(tanh(cat(q_rep, k))) == tanh(q) @ We_q + tanh(k) @ We_k + be
    # (tanh is elementwise, so it commutes with the concat).
    e_q = jnp.sum(jnp.tanh(q) * weq, axis=-1, keepdims=True)             # (Bb, 1)
    e_k = jnp.sum(jnp.tanh(k) * wek, axis=-1, keepdims=True)             # (Bb*S_pad, 1)
    # Relayout the per-row energies into a lane-dense (Bb, S_pad) tile:
    # split leading dims -> minor-2D transpose (XLU) -> merge leading dims.
    # Only Bb*S_pad elements move; softmax/exp/store then run lane-dense.
    e_k = jnp.swapaxes(e_k.reshape(Bb, S_pad, 1), 1, 2).reshape(Bb, S_pad)
    energy = e_q + e_k + be                                              # (Bb, S_pad)

    # energy.masked_fill_(mask, 1e-45)  (finite sentinel, exactly as reference).
    energy = jnp.where(m_ref[...] != 0, jnp.float32(1e-45), energy)

    # Sequence-padding positions get a true -inf so they take zero softmax weight.
    if S_pad != s_real:
        col = jax.lax.broadcasted_iota(jnp.int32, (Bb, S_pad), 1)
        energy = jnp.where(col >= s_real, -jnp.inf, energy)

    # Softmax along the (lane-dense) sequence axis, numerically stabilized.
    e_max = jnp.max(energy, axis=1, keepdims=True)                       # (Bb, 1)
    p = jnp.exp(energy - e_max)
    denom = jnp.sum(p, axis=1, keepdims=True)                            # (Bb, 1)
    inv = pl.reciprocal(denom, approx=True)                              # EUP slot
    inv = inv * (2.0 - denom * inv)                                      # Newton step -> f32 accuracy
    weights = p * inv                                                    # (Bb, S_pad)
    w_out_ref[...] = weights

    # attn[b, :] = sum_s weights[b, s] * states[b, s, :]  (batched M=1 matmul,
    # same 'bqs,bsv->bqv' pattern as the flash-attention PV product).
    attn = jnp.einsum('bqs,bsv->bqv', weights.reshape(Bb, 1, S_pad), st,
                      preferred_element_type=jnp.float32)
    attn_out_ref[...] = attn.reshape(Bb, V)


def _pick_batch_block(batch, s_pad, v_dim, *, per_buffer_bytes, max_batch_block=None):
    """Largest batch block whose states slab fits a small VMEM budget.

    Accounts for minor-dim lane padding (V padded toward 128 in VMEM) so the
    block is sized correctly even for small V, and never blows v7x's 64 MiB
    VMEM when double-buffered.  Blocks are restricted to divisors of `batch`
    that are a multiple of 8 (sublane tile) or the full batch, so every 2-D
    BlockSpec stays (8, 128)-legal in its second-minor dimension.
    """
    lane_v = -(-v_dim // 128) * 128
    row_bytes = s_pad * lane_v * 4                   # f32 states bytes per batch elem
    cap = max(1, per_buffer_bytes // row_bytes)
    if max_batch_block is not None:
        cap = min(cap, max_batch_block)
    divisors = [d for d in range(1, batch + 1) if batch % d == 0]
    aligned = [d for d in divisors if d % 8 == 0 or d == batch]
    fits = [d for d in aligned if d <= cap]
    return max(fits) if fits else min(aligned)


def attention_forward(query, states, mask, params, need_attn=True,
                      *, per_buffer_bytes=4 << 20, max_batch_block=None):
    """params = (Wq, bq, Wk, bk, We, be) in (in_features, out_features) layout.

    query: (B, q_dim), states: (B, S, v_dim), mask: (B, S) (nonzero = masked) or None.
    Returns (attn_weights,) or (attn_weights, attn) like the PyTorch module.
    """
    wq, bq, wk, bk, we, be = params
    B, S, V = states.shape
    Qd = query.shape[-1]
    I = wq.shape[-1]

    # Pad the sequence axis to a sublane multiple (free flatten in-kernel).
    S_pad = -(-S // 8) * 8
    if mask is None:
        mask = jnp.zeros((B, S), dtype=bool)
    mask_i = (mask != 0).astype(jnp.int32)           # lane-dense (B, S) mask
    states_f = states.astype(jnp.float32)
    if S_pad != S:
        states_f = jnp.pad(states_f, ((0, 0), (0, S_pad - S), (0, 0)))
        mask_i = jnp.pad(mask_i, ((0, 0), (0, S_pad - S)))

    # Pack the tiny per-feature parameters into ONE constant block.
    we_q = we[:I, 0].reshape(1, I)                   # half of proj_e acting on q
    we_k = we[I:, 0].reshape(1, I)                   # half of proj_e acting on k
    consts = jnp.concatenate(
        [bq.reshape(1, I), bk.reshape(1, I), we_q, we_k,
         jnp.full((1, I), be[0, 0], dtype=jnp.float32)], axis=0)         # (5, I)

    Bb = _pick_batch_block(B, S_pad, V, per_buffer_bytes=per_buffer_bytes,
                           max_batch_block=max_batch_block)
    grid = (B // Bb,)

    kernel = functools.partial(_attention_kernel, s_real=S)

    batch2 = lambda b: (b, 0)
    batch3 = lambda b: (b, 0, 0)
    const2 = lambda b: (0, 0)

    weights_pad, attn = pl.pallas_call(
        kernel,
        out_shape=(
            jax.ShapeDtypeStruct((B, S_pad), jnp.float32),
            jax.ShapeDtypeStruct((B, V), jnp.float32),
        ),
        grid=grid,
        in_specs=[
            pl.BlockSpec((Bb, Qd), batch2),          # query
            pl.BlockSpec((Bb, S_pad, V), batch3),    # states (dominant stream)
            pl.BlockSpec((Bb, S_pad), batch2),       # mask (lane-dense)
            pl.BlockSpec((Qd, I), const2),           # Wq  (constant block)
            pl.BlockSpec((V, I), const2),            # Wk  (constant block)
            pl.BlockSpec((5, I), const2),            # packed [bq, bk, We_q, We_k, be]
        ],
        out_specs=(
            pl.BlockSpec((Bb, S_pad), batch2),       # attention weights (lane-dense 2-D)
            pl.BlockSpec((Bb, V), batch2),           # attended context
        ),
        compiler_params=pltpu.CompilerParams(
            dimension_semantics=("parallel",),       # megacore-shard the batch axis (v7x)
            vmem_limit_bytes=48 * 1024 * 1024,       # headroom-capped for v7x's 64 MiB VMEM
        ),
    )(query.astype(jnp.float32), states_f, mask_i, wq, wk, consts)

    weights = weights_pad[:, :S]
    out = (weights,)
    if need_attn:
        out += (attn,)
    return out


def reference_attention(query, states, mask, params, need_attn=True):
    """Pure-JAX reference mirroring the PyTorch forward (eval mode)."""
    wq, bq, wk, bk, we, be = params
    B, S, V = states.shape
    hi = jax.lax.Precision.HIGHEST

    q = jax.nn.relu(jnp.dot(query, wq, precision=hi) + bq)            # (B, I)
    q_rep = jnp.repeat(q[:, None, :], S, axis=1)                      # (B, S, I)
    k = jax.nn.relu(jnp.dot(states, wk, precision=hi) + bk)           # (B, S, I)
    cat = jnp.concatenate([q_rep, k], axis=-1)                        # (B, S, 2I)
    energy = jnp.dot(jnp.tanh(cat), we, precision=hi)[..., 0] + be[0, 0]
    energy = jnp.where(mask, jnp.float32(1e-45), energy)
    w = jax.nn.softmax(energy, axis=1)                                # (B, S)
    out = (w,)
    if need_attn:
        out += (jnp.sum(w[:, :, None] * states, axis=1),)             # (B, V)
    return out


if __name__ == "__main__":
    # config: q_dim=32, v_dim=32, internal_dim=32, dropout=0 (eval), need_attn=True
    QD = VD = I = 32

    key0 = jax.random.PRNGKey(0)
    ks = jax.random.split(key0, 12)

    scale = 0.1
    params = (
        scale * jax.random.normal(ks[2], (QD, I), dtype=jnp.float32),      # Wq (in, out)
        scale * jax.random.normal(ks[3], (1, I), dtype=jnp.float32),       # bq
        scale * jax.random.normal(ks[4], (VD, I), dtype=jnp.float32),      # Wk (in, out)
        scale * jax.random.normal(ks[5], (1, I), dtype=jnp.float32),       # bk
        scale * jax.random.normal(ks[6], (2 * I, 1), dtype=jnp.float32),   # We (in, out)
        scale * jax.random.normal(ks[7], (1, 1), dtype=jnp.float32),       # be
    )

    # --- test 1: module-scale shapes (B=2, S=8) -----------------------------
    B, S = 2, 8
    query = jax.random.normal(ks[0], (B, QD), dtype=jnp.float32)
    states = jax.random.normal(ks[1], (B, S, VD), dtype=jnp.float32)
    mask = jnp.zeros((B, S), dtype=bool).at[1, -2:].set(True)

    w, attn = attention_forward(query, states, mask, params, need_attn=True)
    jax.block_until_ready((w, attn))
    w_ref, attn_ref = reference_attention(query, states, mask, params)
    assert w.shape == (B, S) and attn.shape == (B, VD)
    assert jnp.allclose(jnp.sum(w, axis=1), 1.0, atol=1e-5)
    assert jnp.allclose(w, w_ref, rtol=1e-4, atol=1e-4)
    assert jnp.allclose(attn, attn_ref, rtol=1e-4, atol=1e-4)

    # --- test 2: multi-step batch grid + sequence padding (S % 8 != 0) ------
    B2, S2 = 16, 13
    query2 = jax.random.normal(ks[8], (B2, QD), dtype=jnp.float32)
    states2 = jax.random.normal(ks[9], (B2, S2, VD), dtype=jnp.float32)
    mask2 = jax.random.bernoulli(ks[10], 0.3, (B2, S2))

    w2, attn2 = attention_forward(query2, states2, mask2, params,
                                  need_attn=True, max_batch_block=8)
    jax.block_until_ready((w2, attn2))
    w2_ref, attn2_ref = reference_attention(query2, states2, mask2, params)
    assert w2.shape == (B2, S2) and attn2.shape == (B2, VD)
    assert jnp.allclose(jnp.sum(w2, axis=1), 1.0, atol=1e-5)
    assert jnp.allclose(w2, w2_ref, rtol=2e-4, atol=2e-4)
    assert jnp.allclose(attn2, attn2_ref, rtol=2e-4, atol=2e-4)

    print("KERNEL_OK")
</pallas_src>

<mosaic_0001>
module attributes {stable_mosaic.version = 11 : i64} {
  func.func @_attention_kernel(%arg0: i32, %arg1: memref<2x32xf32, #tpu.memory_space<vmem>>, %arg2: memref<2x8x32xf32, #tpu.memory_space<vmem>>, %arg3: memref<2x8xi32, #tpu.memory_space<vmem>>, %arg4: memref<32x32xf32, #tpu.memory_space<vmem>>, %arg5: memref<32x32xf32, #tpu.memory_space<vmem>>, %arg6: memref<5x32xf32, #tpu.memory_space<vmem>>, %arg7: memref<2x8xf32, #tpu.memory_space<vmem>>, %arg8: memref<2x32xf32, #tpu.memory_space<vmem>>) attributes {dimension_semantics = [#tpu.dimension_semantics<parallel>], iteration_bounds = array<i64: 1>, scalar_prefetch = 0 : i64, scratch_operands = 0 : i64, tpu.core_type = #tpu.core_type<tc>, window_params = [{transform_indices = @transform_0, window_bounds = array<i64: 2, 32>}, {transform_indices = @transform_1, window_bounds = array<i64: 2, 8, 32>}, {transform_indices = @transform_2, window_bounds = array<i64: 2, 8>}, {pipeline_mode = #tpu.pipeline_mode<synchronous>, transform_indices = @transform_3, window_bounds = array<i64: 32, 32>}, {pipeline_mode = #tpu.pipeline_mode<synchronous>, transform_indices = @transform_4, window_bounds = array<i64: 32, 32>}, {pipeline_mode = #tpu.pipeline_mode<synchronous>, transform_indices = @transform_5, window_bounds = array<i64: 5, 32>}, {transform_indices = @transform_6, window_bounds = array<i64: 2, 8>}, {transform_indices = @transform_7, window_bounds = array<i64: 2, 32>}]} {
    %c0 = arith.constant 0 : index
    %c0_0 = arith.constant 0 : index
    %0 = vector.load %arg6[%c0, %c0_0] : memref<5x32xf32, #tpu.memory_space<vmem>>, vector<1x32xf32>
    %c1 = arith.constant 1 : index
    %c0_1 = arith.constant 0 : index
    %1 = vector.load %arg6[%c1, %c0_1] : memref<5x32xf32, #tpu.memory_space<vmem>>, vector<1x32xf32>
    %c2 = arith.constant 2 : index
    %c0_2 = arith.constant 0 : index
    %2 = vector.load %arg6[%c2, %c0_2] : memref<5x32xf32, #tpu.memory_space<vmem>>, vector<1x32xf32>
    %c3 = arith.constant 3 : index
    %c0_3 = arith.constant 0 : index
    %3 = vector.load %arg6[%c3, %c0_3] : memref<5x32xf32, #tpu.memory_space<vmem>>, vector<1x32xf32>
    %c4 = arith.constant 4 : index
    %c0_4 = arith.constant 0 : index
    %4 = vector.load %arg6[%c4, %c0_4] : memref<5x32xf32, #tpu.memory_space<vmem>>, vector<1x1xf32>
    %c0_5 = arith.constant 0 : index
    %c0_6 = arith.constant 0 : index
    %5 = vector.load %arg1[%c0_5, %c0_6] : memref<2x32xf32, #tpu.memory_space<vmem>>, vector<2x32xf32>
    %c0_7 = arith.constant 0 : index
    %c0_8 = arith.constant 0 : index
    %6 = vector.load %arg4[%c0_7, %c0_8] : memref<32x32xf32, #tpu.memory_space<vmem>>, vector<32x32xf32>
    %cst = arith.constant dense<0.000000e+00> : vector<2x32xf32>
    %7 = tpu.matmul %5, %6, %cst {dimension_numbers = #tpu.dot_dimension_numbers<[1], [0], [0], [1], [0, 0, 1, 1], [], []>} : vector<2x32xf32>, vector<32x32xf32>, vector<2x32xf32> -> vector<2x32xf32>
    %8 = vector.broadcast %0 : vector<1x32xf32> to vector<2x32xf32>
    %9 = arith.addf %7, %8 : vector<2x32xf32>
    %cst_9 = arith.constant 0.000000e+00 : f32
    %10 = vector.broadcast %cst_9 : f32 to vector<2x32xf32>
    %11 = arith.maximumf %9, %10 : vector<2x32xf32>
    %c0_10 = arith.constant 0 : index
    %c0_11 = arith.constant 0 : index
    %c0_12 = arith.constant 0 : index
    %12 = vector.load %arg2[%c0_10, %c0_11, %c0_12] : memref<2x8x32xf32, #tpu.memory_space<vmem>>, vector<2x8x32xf32>
    %13 = vector.shape_cast %12 : vector<2x8x32xf32> to vector<16x32xf32>
    %c0_13 = arith.constant 0 : index
    %c0_14 = arith.constant 0 : index
    %14 = vector.load %arg5[%c0_13, %c0_14] : memref<32x32xf32, #tpu.memory_space<vmem>>, vector<32x32xf32>
    %cst_15 = arith.constant dense<0.000000e+00> : vector<16x32xf32>
    %15 = tpu.matmul %13, %14, %cst_15 {dimension_numbers = #tpu.dot_dimension_numbers<[1], [0], [0], [1], [0, 0, 1, 1], [], []>} : vector<16x32xf32>, vector<32x32xf32>, vector<16x32xf32> -> vector<16x32xf32>
    %16 = vector.broadcast %1 : vector<1x32xf32> to vector<16x32xf32>
    %17 = arith.addf %15, %16 : vector<16x32xf32>
    %cst_16 = arith.constant 0.000000e+00 : f32
    %18 = vector.broadcast %cst_16 : f32 to vector<16x32xf32>
    %19 = arith.maximumf %17, %18 : vector<16x32xf32>
    %20 = math.tanh %11 : vector<2x32xf32>
    %21 = vector.broadcast %2 : vector<1x32xf32> to vector<2x32xf32>
    %22 = arith.mulf %20, %21 : vector<2x32xf32>
    %cst_17 = arith.constant dense<0.000000e+00> : vector<2xf32>
    %23 = vector.multi_reduction <add>, %22, %cst_17 [1] : vector<2x32xf32> to vector<2xf32>
    %24 = vector.shape_cast %23 : vector<2xf32> to vector<2x1xf32>
    %25 = math.tanh %19 : vector<16x32xf32>
    %26 = vector.broadcast %3 : vector<1x32xf32> to vector<16x32xf32>
    %27 = arith.mulf %25, %26 : vector<16x32xf32>
    %cst_18 = arith.constant dense<0.000000e+00> : vector<16xf32>
    %28 = vector.multi_reduction <add>, %27, %cst_18 [1] : vector<16x32xf32> to vector<16xf32>
    %29 = vector.shape_cast %28 : vector<16xf32> to vector<16x1xf32>
    %30 = vector.shape_cast %29 : vector<16x1xf32> to vector<2x8x1xf32>
    %31 = tpu.transpose %30, [0, 2, 1] : vector<2x8x1xf32> -> vector<2x1x8xf32>
    %32 = vector.shape_cast %31 : vector<2x1x8xf32> to vector<2x8xf32>
    %33 = vector.broadcast %24 : vector<2x1xf32> to vector<2x8xf32>
    %34 = arith.addf %33, %32 : vector<2x8xf32>
    %35 = vector.broadcast %4 : vector<1x1xf32> to vector<2x8xf32>
    %36 = arith.addf %34, %35 : vector<2x8xf32>
    %c0_19 = arith.constant 0 : index
    %c0_20 = arith.constant 0 : index
    %37 = vector.load %arg3[%c0_19, %c0_20] : memref<2x8xi32, #tpu.memory_space<vmem>>, vector<2x8xi32>
    %c0_i32 = arith.constant 0 : i32
    %38 = vector.broadcast %c0_i32 : i32 to vector<2x8xi32>
    %39 = arith.cmpi ne, %37, %38 : vector<2x8xi32>
    %cst_21 = arith.constant 1.401300e-45 : f32
    %40 = vector.broadcast %cst_21 : f32 to vector<2x8xf32>
    %41 = arith.select %39, %40, %36 : vector<2x8xi1>, vector<2x8xf32>
    %cst_22 = arith.constant dense<0xFF800000> : vector<2xf32>
    %42 = vector.multi_reduction <maximumf>, %41, %cst_22 [1] : vector<2x8xf32> to vector<2xf32>
    %43 = vector.shape_cast %42 : vector<2xf32> to vector<2x1xf32>
    %44 = vector.broadcast %43 : vector<2x1xf32> to vector<2x8xf32>
    %45 = arith.subf %41, %44 : vector<2x8xf32>
    %46 = math.exp %45 : vector<2x8xf32>
    %cst_23 = arith.constant dense<0.000000e+00> : vector<2xf32>
    %47 = vector.multi_reduction <add>, %46, %cst_23 [1] : vector<2x8xf32> to vector<2xf32>
    %48 = vector.shape_cast %47 : vector<2xf32> to vector<2x1xf32>
    %49 = tpu.reciprocal %48 {approx = true} : vector<2x1xf32> -> vector<2x1xf32>
    %50 = arith.mulf %48, %49 : vector<2x1xf32>
    %cst_24 = arith.constant 2.000000e+00 : f32
    %51 = vector.broadcast %cst_24 : f32 to vector<2x1xf32>
    %52 = arith.subf %51, %50 : vector<2x1xf32>
    %53 = arith.mulf %49, %52 : vector<2x1xf32>
    %54 = vector.broadcast %53 : vector<2x1xf32> to vector<2x8xf32>
    %55 = arith.mulf %46, %54 : vector<2x8xf32>
    %c0_25 = arith.constant 0 : index
    %c0_26 = arith.constant 0 : index
    %56 = vector.load %arg7[%c0_25, %c0_26] : memref<2x8xf32, #tpu.memory_space<vmem>>, vector<2x8xf32>
    tpu.vector_store %arg7[%c0_25, %c0_26], %55 {strides = array<i32>} : memref<2x8xf32, #tpu.memory_space<vmem>>, vector<2x8xf32>,
    %57 = vector.shape_cast %55 : vector<2x8xf32> to vector<2x1x8xf32>
    "tpu.trace_start"() <{level = 10 : i32, message = "bqs,bsv->bqv"}> : () -> ()
    %cst_27 = arith.constant dense<0.000000e+00> : vector<2x1x32xf32>
    %58 = tpu.matmul %57, %12, %cst_27 {dimension_numbers = #tpu.dot_dimension_numbers<[2], [1], [1], [2], [0, 0, 0, 1, 1, 2], [0], [0]>} : vector<2x1x8xf32>, vector<2x8x32xf32>, vector<2x1x32xf32> -> vector<2x1x32xf32>
    "tpu.trace_stop"() : () -> ()
    %59 = vector.shape_cast %58 : vector<2x1x32xf32> to vector<2x32xf32>
    %c0_28 = arith.constant 0 : index
    %c0_29 = arith.constant 0 : index
    %60 = vector.load %arg8[%c0_28, %c0_29] : memref<2x32xf32, #tpu.memory_space<vmem>>, vector<2x32xf32>
    tpu.vector_store %arg8[%c0_28, %c0_29], %59 {strides = array<i32>} : memref<2x32xf32, #tpu.memory_space<vmem>>, vector<2x32xf32>,
    return
  }
  func.func @transform_0(%arg0: i32) -> (i32, i32) {
    %c0_i32 = arith.constant 0 : i32
    %c0_i32_0 = arith.constant 0 : i32
    return %arg0, %c0_i32 : i32, i32
  }
  func.func @transform_1(%arg0: i32) -> (i32, i32, i32) {
    %c0_i32 = arith.constant 0 : i32
    %c0_i32_0 = arith.constant 0 : i32
    %c0_i32_1 = arith.constant 0 : i32
    return %arg0, %c0_i32, %c0_i32_0 : i32, i32, i32
  }
  func.func @transform_2(%arg0: i32) -> (i32, i32) {
    %c0_i32 = arith.constant 0 : i32
    %c0_i32_0 = arith.constant 0 : i32
    return %arg0, %c0_i32 : i32, i32
  }
  func.func @transform_3(%arg0: i32) -> (i32, i32) {
    %c0_i32 = arith.constant 0 : i32
    %c0_i32_0 = arith.constant 0 : i32
    %c0_i32_1 = arith.constant 0 : i32
    return %c0_i32, %c0_i32_0 : i32, i32
  }
  func.func @transform_4(%arg0: i32) -> (i32, i32) {
    %c0_i32 = arith.constant 0 : i32
    %c0_i32_0 = arith.constant 0 : i32
    %c0_i32_1 = arith.constant 0 : i32
    return %c0_i32, %c0_i32_0 : i32, i32
  }
  func.func @transform_5(%arg0: i32) -> (i32, i32) {
    %c0_i32 = arith.constant 0 : i32
    %c0_i32_0 = arith.constant 0 : i32
    %c0_i32_1 = arith.constant 0 : i32
    return %c0_i32, %c0_i32_0 : i32, i32
  }
  func.func @transform_6(%arg0: i32) -> (i32, i32) {
    %c0_i32 = arith.constant 0 : i32
    %c0_i32_0 = arith.constant 0 : i32
    return %arg0, %c0_i32 : i32, i32
  }
  func.func @transform_7(%arg0: i32) -> (i32, i32) {
    %c0_i32 = arith.constant 0 : i32
    %c0_i32_0 = arith.constant 0 : i32
    return %arg0, %c0_i32 : i32, i32
  }
}

</mosaic_0001>

<llo_original>
// kernel: tpu_custom_call.1
$region0: #{tpu_custom_call.1}
  #allocation0 [shape = 'u32[]', space=smem, size = 0x4, offset = 0x4, fixed_abs, tag = 'smem constant byte address 0x4 - core index']
  #allocation1 [shape = 'u32[72,128]{1,0:T(1,128)}', space=vmem, size = 0x9000, scoped, tag = 'internal scratch']
  %s0 = inlined_call_operand.hbm [shape: f32[2,32], index: 0, kind: input, shape index: {}]
  %s1 = inlined_call_operand.hbm [shape: f32[2,8,32], index: 1, kind: input, shape index: {}]
  %s2 = inlined_call_operand.hbm [shape: s32[2,8], index: 2, kind: input, shape index: {}]
  %s3 = inlined_call_operand.hbm [shape: f32[32,32], index: 3, kind: input, shape index: {}]
  %s4 = inlined_call_operand.hbm [shape: f32[32,32], index: 4, kind: input, shape index: {}]
  %s5 = inlined_call_operand.hbm [shape: f32[5,32], index: 5, kind: input, shape index: {}]
  %s6 = inlined_call_operand.hbm [shape: f32[2,8], index: 6, kind: output, shape index: {0}]
  %s7 = inlined_call_operand.hbm [shape: f32[2,32], index: 7, kind: output, shape index: {1}]
  %8 = xla_tuple %s6, %s7
  %s9 = sld [smem:[#allocation0]]
  $region66: #{tpu_custom_call.1} parent=0
    _
  %s11 = ssub.s32 1, %s9
  %s12 = scalar_select 0, %s11, %s9
  $region1: #{tpu_custom_call.1} parent=0
    #allocation2 [shape = 'u8[1024]{0}', space=vmem, size = 0x400, scoped, tag = 'input window, operand 0, single buffered']
    #allocation3 [shape = 's32[1]{0}', space=sflag, size = 0x4, scoped, tag = 'scoped memory for tpu_custom_call.1']
    #allocation4 [shape = 's32[1]{0}', space=sflag, size = 0x4, scoped, tag = 'scoped memory for tpu_custom_call.1']
    #allocation5 [shape = 'u8[8192]{0}', space=vmem, size = 0x2000, scoped, tag = 'input window, operand 1, single buffered']
    #allocation6 [shape = 's32[1]{0}', space=sflag, size = 0x4, scoped, tag = 'scoped memory for tpu_custom_call.1']
    #allocation7 [shape = 'u8[1024]{0}', space=vmem, size = 0x400, scoped, tag = 'input window, operand 2, single buffered']
    #allocation8 [shape = 'u8[16384]{0}', space=vmem, size = 0x4000, scoped, tag = 'input window, operand 3, single buffered']
    #allocation9 [shape = 's32[1]{0}', space=sflag, size = 0x4, scoped, tag = 'scoped memory for tpu_custom_call.1']
    #allocation10 [shape = 'u8[16384]{0}', space=vmem, size = 0x4000, scoped, tag = 'input window, operand 4, single buffered']
    #allocation11 [shape = 'u8[4096]{0}', space=vmem, size = 0x1000, scoped, tag = 'input window, operand 5, single buffered']
    #allocation12 [shape = 's32[1]{0}', space=sflag, size = 0x4, scoped, tag = 'scoped memory for tpu_custom_call.1']
    #allocation13 [shape = 'u8[1024]{0}', space=vmem, size = 0x400, scoped, tag = 'output window, operand 0, single buffered']
    #allocation14 [shape = 'u8[1024]{0}', space=vmem, size = 0x400, scoped, tag = 'output window, operand 1, single buffered']
    #allocation15 [shape = 's32[1]{0}', space=sflag, size = 0x4, scoped, tag = 'scoped memory for tpu_custom_call.1']
    %13 = vsyncpa [#allocation3], 0
    %14 = vsyncpa [#allocation6], 0
    %15 = vsyncpa [#allocation9], 0
    %16 = vsyncpa [#allocation12], 0
    %17 = vsyncpa [#allocation4], 0
    %18 = vsyncpa [#allocation15], 0
    // Predicated region
    $region2: #{tpu_custom_call.1} parent=1 // pred_check
      _
    $region3: #{tpu_custom_call.1} parent=1 // pred_check_branch
      %20 = sbr.rel (0) target = $region5
    $region4: #{tpu_custom_call.1} parent=1 // pred_region
      %22 = vsyncadd [#allocation3], 0
      %s24 = sshll.u32 %s0, 4
      %s25 = int_to_ptr.hbm [resolvable:$true] %s24
      %s26 = sshll.u32 [#allocation2], 4
      %s27 = int_to_ptr.vmem [resolvable:$true] %s26
      %29 = dma.hbm_to_vmem [thread:$0]  %s25, 32, %s27, [#allocation3]
    $region5: #{tpu_custom_call.1} parent=1 // pred_fallthru
      _
    // Predicated region
    $region6: #{tpu_custom_call.1} parent=1 // pred_check
      _
    $region7: #{tpu_custom_call.1} parent=1 // pred_check_branch
      %31 = sbr.rel (0) target = $region9
    $region8: #{tpu_custom_call.1} parent=1 // pred_region
      %33 = vsyncadd [#allocation6], 0
      %s34 = sshll.u32 %s1, 4
      %s35 = int_to_ptr.hbm [resolvable:$true] %s34
      %s36 = sshll.u32 [#allocation5], 4
      %s37 = int_to_ptr.vmem [resolvable:$true] %s36
      %42 = dma.hbm_to_vmem [thread:$0]  %s35, 256, %s37, [#allocation6], 128, 128, 8
    $region9: #{tpu_custom_call.1} parent=1 // pred_fallthru
      _
    // Predicated region
    $region10: #{tpu_custom_call.1} parent=1 // pred_check
      _
    $region11: #{tpu_custom_call.1} parent=1 // pred_check_branch
      %44 = sbr.rel (0) target = $region13
    $region12: #{tpu_custom_call.1} parent=1 // pred_region
      %46 = vsyncadd [#allocation6], 0
      %s48 = sshll.u32 %s2, 4
      %s49 = int_to_ptr.hbm [resolvable:$true] %s48
      %s50 = sshll.u32 [#allocation7], 4
      %s51 = int_to_ptr.vmem [resolvable:$true] %s50
      %53 = dma.hbm_to_vmem [thread:$0]  %s49, 32, %s51, [#allocation6]
    $region13: #{tpu_custom_call.1} parent=1 // pred_fallthru
      _
    // Predicated region
    $region14: #{tpu_custom_call.1} parent=1 // pred_check
      _
    $region15: #{tpu_custom_call.1} parent=1 // pred_check_branch
      %55 = sbr.rel (0) target = $region17
    $region16: #{tpu_custom_call.1} parent=1 // pred_region
      %57 = vsyncadd [#allocation9], 0
      %s58 = sshll.u32 %s3, 4
      %s59 = int_to_ptr.hbm [resolvable:$true] %s58
      %s60 = sshll.u32 [#allocation8], 4
      %s61 = int_to_ptr.vmem [resolvable:$true] %s60
      %66 = dma.hbm_to_vmem [thread:$0]  %s59, 512, %s61, [#allocation9], 128, 128, 8
    $region17: #{tpu_custom_call.1} parent=1 // pred_fallthru
      _
    // Predicated region
    $region18: #{tpu_custom_call.1} parent=1 // pred_check
      _
    $region19: #{tpu_custom_call.1} parent=1 // pred_check_branch
      %68 = sbr.rel (0) target = $region21
    $region20: #{tpu_custom_call.1} parent=1 // pred_region
      %70 = vsyncadd [#allocation9], 0
      %s71 = sshll.u32 %s4, 4
      %s72 = int_to_ptr.hbm [resolvable:$true] %s71
      %s73 = sshll.u32 [#allocation10], 4
      %s74 = int_to_ptr.vmem [resolvable:$true] %s73
      %79 = dma.hbm_to_vmem [thread:$0]  %s72, 512, %s74, [#allocation9], 128, 128, 8
    $region21: #{tpu_custom_call.1} parent=1 // pred_fallthru
      _
    // Predicated region
    $region22: #{tpu_custom_call.1} parent=1 // pred_check
      _
    $region23: #{tpu_custom_call.1} parent=1 // pred_check_branch
      %81 = sbr.rel (0) target = $region25
    $region24: #{tpu_custom_call.1} parent=1 // pred_region
      %83 = vsyncadd [#allocation12], 0
      %s85 = sshll.u32 %s5, 4
      %s86 = int_to_ptr.hbm [resolvable:$true] %s85
      %s87 = sshll.u32 [#allocation11], 4
      %s88 = int_to_ptr.vmem [resolvable:$true] %s87
      %90 = dma.hbm_to_vmem [thread:$0]  %s86, 128, %s88, [#allocation12]
    $region25: #{tpu_custom_call.1} parent=1 // pred_fallthru
      _
    // Predicated region
    $region26: #{tpu_custom_call.1} parent=1 // pred_check
      _
    $region27: #{tpu_custom_call.1} parent=1 // pred_check_branch
      %92 = sbr.rel (0) target = $region29
    $region28: #{tpu_custom_call.1} parent=1 // pred_region
      %94 = dma.done [#allocation3], 32
    $region29: #{tpu_custom_call.1} parent=1 // pred_fallthru
      _
    // Predicated region
    $region30: #{tpu_custom_call.1} parent=1 // pred_check
      _
    $region31: #{tpu_custom_call.1} parent=1 // pred_check_branch
      %96 = sbr.rel (0) target = $region33
    $region32: #{tpu_custom_call.1} parent=1 // pred_region
      %98 = dma.done [#allocation6], 256
    $region33: #{tpu_custom_call.1} parent=1 // pred_fallthru
      _
    // Predicated region
    $region34: #{tpu_custom_call.1} parent=1 // pred_check
      _
    $region35: #{tpu_custom_call.1} parent=1 // pred_check_branch
      %100 = sbr.rel (0) target = $region37
    $region36: #{tpu_custom_call.1} parent=1 // pred_region
      %102 = dma.done [#allocation6], 32
    $region37: #{tpu_custom_call.1} parent=1 // pred_fallthru
      _
    // Predicated region
    $region38: #{tpu_custom_call.1} parent=1 // pred_check
      _
    $region39: #{tpu_custom_call.1} parent=1 // pred_check_branch
      %104 = sbr.rel (0) target = $region41
    $region40: #{tpu_custom_call.1} parent=1 // pred_region
      %106 = dma.done [#allocation9], 512
    $region41: #{tpu_custom_call.1} parent=1 // pred_fallthru
      _
    // Predicated region
    $region42: #{tpu_custom_call.1} parent=1 // pred_check
      _
    $region43: #{tpu_custom_call.1} parent=1 // pred_check_branch
      %108 = sbr.rel (0) target = $region45
    $region44: #{tpu_custom_call.1} parent=1 // pred_region
      %110 = dma.done [#allocation9], 512
    $region45: #{tpu_custom_call.1} parent=1 // pred_fallthru
      _
    // Predicated region
    $region46: #{tpu_custom_call.1} parent=1 // pred_check
      _
    $region47: #{tpu_custom_call.1} parent=1 // pred_check_branch
      %112 = sbr.rel (0) target = $region49
    $region48: #{tpu_custom_call.1} parent=1 // pred_region
      %114 = dma.done [#allocation12], 128
    $region49: #{tpu_custom_call.1} parent=1 // pred_fallthru
      _
    %v115 = vld [vmem:[#allocation11] sm:$0x1]
    %v116 = vld [vmem:[#allocation11 + $0x1] sm:$0x1]
    %v117 = vld [vmem:[#allocation11 + $0x2] sm:$0x1]
    %v118 = vld [vmem:[#allocation11 + $0x3] sm:$0x1]
    %v119 = vld [vmem:[#allocation11 + $0x4] sm:$0x1]
    %v120 = vld [vmem:[#allocation2] sm:$0x3]
    %v121 = vld [vmem:[#allocation8] sm:$0xff]
    %v122 = vld [vmem:[#allocation8 + $0x8] sm:$0xff]
    %v123 = vld [vmem:[#allocation8 + $0x10] sm:$0xff]
    %v124 = vld [vmem:[#allocation8 + $0x18] sm:$0xff]
    %v125 = vperm.slane %v115, 0
    %vm126 = vcmask 261120
    %v128 = vsel %vm126, %v120, 0
    %130 = vmatpush.msra.mxu0 0.0
    %131 = vmatpush.msra.mxu0 0.0
    %132 = vmatpush.msra.mxu0 0.0
    %133 = vmatpush.msra.mxu0 0.0
    %134 = vmatpush.msra.mxu0 0.0
    %135 = vmatpush.msra.mxu0 0.0
    %136 = vmatpush.msra.mxu0 0.0
    %137 = vmatpush.msra.mxu0 0.0
    %138 = vmatpush.msra.mxu0 0.0
    %139 = vmatpush.msra.mxu0 0.0
    %140 = vmatpush.msra.mxu0 0.0
    %141 = vmatpush.msra.mxu0 0.0
    %142 = vmatpush.msra.mxu0 %v124
    %143 = vmatpush.msra.mxu0 %v123
    %144 = vmatpush.msra.mxu0 %v122
    %145 = vmatpush.msra.mxu0 %v121
    %146 = vmatmul.f32.gmra.mxu0 %v128
    %v147 = vpop.f32.mrf.mxu0
    %v148 = vadd.f32 %v125, %v147
    %149 = vdwg.mxu0
    %v150 = vmax.f32 %v148, 0.0
    %v151 = vld [vmem:[#allocation5] sm:$0xff]
    %v152 = vld [vmem:[#allocation5 + $0x8] sm:$0xff]
    %v153 = vld [vmem:[#allocation10] sm:$0xff]
    %v154 = vld [vmem:[#allocation10 + $0x8] sm:$0xff]
    %v155 = vld [vmem:[#allocation10 + $0x10] sm:$0xff]
    %v156 = vld [vmem:[#allocation10 + $0x18] sm:$0xff]
    %v157 = vperm.slane %v116, 0
    %v159 = vsel %vm126, %v151, 0
    %v162 = vsel %vm126, %v152, 0
    %164 = vmatpush.msra.mxu0 0.0
    %165 = vmatpush.msra.mxu0 0.0
    %166 = vmatpush.msra.mxu0 0.0
    %167 = vmatpush.msra.mxu0 0.0
    %168 = vmatpush.msra.mxu0 0.0
    %169 = vmatpush.msra.mxu0 0.0
    %170 = vmatpush.msra.mxu0 0.0
    %171 = vmatpush.msra.mxu0 0.0
    %172 = vmatpush.msra.mxu0 0.0
    %173 = vmatpush.msra.mxu0 0.0
    %174 = vmatpush.msra.mxu0 0.0
    %175 = vmatpush.msra.mxu0 0.0
    %176 = vmatpush.msra.mxu0 %v156
    %177 = vmatpush.msra.mxu0 %v155
    %178 = vmatpush.msra.mxu0 %v154
    %179 = vmatpush.msra.mxu0 %v153
    %180 = vmatmul.f32.gmra.mxu0 %v159
    %v181 = vpop.f32.mrf.mxu0
    %v182 = vadd.f32 %v157, %v181
    %183 = vmatmul.f32.gmra.mxu0 %v162
    %v184 = vpop.f32.mrf.mxu0
    %v185 = vadd.f32 %v157, %v184
    %186 = vdwg.mxu0
    %v187 = vmax.f32 %v182, 0.0
    %v188 = vmax.f32 %v185, 0.0
    %v189 = vtanh.pop %v150
    %v190 = vperm.slane %v117, 0
    %v191 = vmul.f32 %v189, %v190
    %vm192 = vcmask 254976
    %v193 = vsel %vm192, %v191, 0.0
    %194 = vadd.xlane.f32.xlu0 %v193
    %v195 = vpop.xlane.xlu0 %194
    %v196 = vtanh.pop %v187
    %v197 = vtanh.pop %v188
    %v198 = vperm.slane %v118, 0
    %v199 = vmul.f32 %v196, %v198
    %v200 = vmul.f32 %v197, %v198
    %v201 = vsel %vm126, %v199, 0.0
    %202 = vadd.xlane.f32.xlu0 %v201
    %v203 = vpop.xlane.xlu0 %202
    %v204 = vsel %vm126, %v200, 0.0
    %205 = vadd.xlane.f32.xlu0 %v204
    %v206 = vpop.xlane.xlu0 %205
    %207 = vxpose.xlu0.b32.start [1/16] %v203, 128
    %208 = vxpose.xlu0.b32.cont [2/16] 0.0, 128
    %209 = vxpose.xlu0.b32.cont [3/16] 0.0, 128
    %210 = vxpose.xlu0.b32.cont [4/16] 0.0, 128
    %211 = vxpose.xlu0.b32.cont [5/16] 0.0, 128
    %212 = vxpose.xlu0.b32.cont [6/16] 0.0, 128
    %213 = vxpose.xlu0.b32.cont [7/16] 0.0, 128
    %214 = vxpose.xlu0.b32.cont [8/16] 0.0, 128
    %215 = vxpose.xlu0.b32.cont [9/16] 0.0, 128
    %216 = vxpose.xlu0.b32.cont [10/16] 0.0, 128
    %217 = vxpose.xlu0.b32.cont [11/16] 0.0, 128
    %218 = vxpose.xlu0.b32.cont [12/16] 0.0, 128
    %219 = vxpose.xlu0.b32.cont [13/16] 0.0, 128
    %220 = vxpose.xlu0.b32.cont [14/16] 0.0, 128
    %221 = vxpose.xlu0.b32.cont [15/16] 0.0, 128
    %222 = vxpose.xlu0.b32.end [16/16] 0.0, 128
    %v223 = vpop.trf.xlu0
    %v224 = vpop.trf.xlu0
    %v225 = vpop.trf.xlu0
    %v226 = vpop.trf.xlu0
    %v227 = vpop.trf.xlu0
    %v228 = vpop.trf.xlu0
    %v229 = vpop.trf.xlu0
    %v230 = vpop.trf.xlu0
    %v231 = vpop.trf.xlu0
    %v232 = vpop.trf.xlu0
    %v233 = vpop.trf.xlu0
    %v234 = vpop.trf.xlu0
    %v235 = vpop.trf.xlu0
    %v236 = vpop.trf.xlu0
    %v237 = vpop.trf.xlu0
    %v238 = vpop.trf.xlu0
    %239 = vxpose.xlu0.b32.start [1/16] %v206, 128
    %240 = vxpose.xlu0.b32.cont [2/16] 0.0, 128
    %241 = vxpose.xlu0.b32.cont [3/16] 0.0, 128
    %242 = vxpose.xlu0.b32.cont [4/16] 0.0, 128
    %243 = vxpose.xlu0.b32.cont [5/16] 0.0, 128
    %244 = vxpose.xlu0.b32.cont [6/16] 0.0, 128
    %245 = vxpose.xlu0.b32.cont [7/16] 0.0, 128
    %246 = vxpose.xlu0.b32.cont [8/16] 0.0, 128
    %247 = vxpose.xlu0.b32.cont [9/16] 0.0, 128
    %248 = vxpose.xlu0.b32.cont [10/16] 0.0, 128
    %249 = vxpose.xlu0.b32.cont [11/16] 0.0, 128
    %250 = vxpose.xlu0.b32.cont [12/16] 0.0, 128
    %251 = vxpose.xlu0.b32.cont [13/16] 0.0, 128
    %252 = vxpose.xlu0.b32.cont [14/16] 0.0, 128
    %253 = vxpose.xlu0.b32.cont [15/16] 0.0, 128
    %254 = vxpose.xlu0.b32.end [16/16] 0.0, 128
    %v255 = vpop.trf.xlu0
    %v256 = vpop.trf.xlu0
    %v257 = vpop.trf.xlu0
    %v258 = vpop.trf.xlu0
    %v259 = vpop.trf.xlu0
    %v260 = vpop.trf.xlu0
    %v261 = vpop.trf.xlu0
    %v262 = vpop.trf.xlu0
    %v263 = vpop.trf.xlu0
    %v264 = vpop.trf.xlu0
    %v265 = vpop.trf.xlu0
    %v266 = vpop.trf.xlu0
    %v267 = vpop.trf.xlu0
    %v268 = vpop.trf.xlu0
    %v269 = vpop.trf.xlu0
    %v270 = vpop.trf.xlu0
    %v273 = vrot.slane %v255, 7
    %vm274 = vcmask 1041409
    %v275 = vsel %vm274, %v273, %v223
    %v277 = vadd.f32 %v195, %v275
    %s279 = vtos %v119
    %v280 = vstv %s279
    %v282 = vadd.f32 %v277, %v280
    %v283 = vld [vmem:[#allocation7] sm:$0x3]
    %vm284 = vcmp.ne.s32.totalorder %v283, 0
    %v285 = vsel %vm284, 1e-45, %v282
    %vm286 = vcmask 58368
    %v287 = vsel %vm286, %v285, -inf
    %288 = vmax.xlane.f32.xlu0 %v287
    %v289 = vpop.xlane.xlu0 %288
    %v290 = vsub.f32 %v285, %v289
    %v291 = vmul.f32 %v290, 1.442695
    %v292 = vpow.pop %v291
    %v293 = vsel %vm286, %v292, 0.0
    %294 = vadd.xlane.f32.xlu0 %v293
    %v295 = vpop.xlane.xlu0 %294
    %v296 = vrcp.pop %v295
    %v297 = vmul.f32 %v295, %v296
    %v298 = vsub.f32 2.0, %v297
    %v299 = vmul.f32 %v296, %v298
    %v300 = vmul.f32 %v292, %v299
    %301 = vst.msk [vmem:[#allocation13] sm:$0x3] %vm286, %v300
    %v303 = vrot.slane %v300, 1
    %vm304 = vcmask 64512
    %v305 = vsel %vm304, %v300, 0
    %307 = vmatpush.msra.mxu0 0.0
    %308 = vmatpush.msra.mxu0 0.0
    %309 = vmatpush.msra.mxu0 0.0
    %310 = vmatpush.msra.mxu0 0.0
    %311 = vmatpush.msra.mxu0 0.0
    %312 = vmatpush.msra.mxu0 0.0
    %313 = vmatpush.msra.mxu0 0.0
    %314 = vmatpush.msra.mxu0 0.0
    %315 = vmatpush.msra.mxu0 0.0
    %316 = vmatpush.msra.mxu0 0.0
    %317 = vmatpush.msra.mxu0 0.0
    %318 = vmatpush.msra.mxu0 0.0
    %319 = vmatpush.msra.mxu0 0.0
    %320 = vmatpush.msra.mxu0 0.0
    %321 = vmatpush.msra.mxu0 0.0
    %322 = vmatpush.msra.mxu0 %v151
    %323 = vmatmul.f32.gmra.mxu0 %v305
    %v324 = vpop.f32.mrf.mxu0
    %v325 = vadd.f32 0.0, %v324
    %326 = vdwg.mxu0
    %v327 = vsel %vm304, %v303, 0
    %329 = vmatpush.msra.mxu0 0.0
    %330 = vmatpush.msra.mxu0 0.0
    %331 = vmatpush.msra.mxu0 0.0
    %332 = vmatpush.msra.mxu0 0.0
    %333 = vmatpush.msra.mxu0 0.0
    %334 = vmatpush.msra.mxu0 0.0
    %335 = vmatpush.msra.mxu0 0.0
    %336 = vmatpush.msra.mxu0 0.0
    %337 = vmatpush.msra.mxu0 0.0
    %338 = vmatpush.msra.mxu0 0.0
    %339 = vmatpush.msra.mxu0 0.0
    %340 = vmatpush.msra.mxu0 0.0
    %341 = vmatpush.msra.mxu0 0.0
    %342 = vmatpush.msra.mxu0 0.0
    %343 = vmatpush.msra.mxu0 0.0
    %344 = vmatpush.msra.mxu0 %v152
    %345 = vmatmul.f32.gmra.mxu0 %v327
    %v346 = vpop.f32.mrf.mxu0
    %v347 = vadd.f32 0.0, %v346
    %348 = vdwg.mxu0
    %v351 = vrot.slane %v347, 7
    %v352 = vsel %vm274, %v351, %v325
    %354 = vst.msk [vmem:[#allocation14] sm:$0x3] %vm192, %v352
    // Predicated region
    $region50: #{tpu_custom_call.1} parent=1 // pred_check
      _
    $region51: #{tpu_custom_call.1} parent=1 // pred_check_branch
      %356 = sbr.rel (0) target = $region53
    $region52: #{tpu_custom_call.1} parent=1 // pred_region
      %358 = vsyncadd [#allocation4], 0
      %s360 = sshll.u32 [#allocation13], 4
      %s361 = int_to_ptr.vmem [resolvable:$true] %s360
      %s362 = sshll.u32 %s6, 4
      %s363 = int_to_ptr.hbm [resolvable:$true] %s362
      %365 = dma.vmem_to_hbm [thread:$0]  %s361, 32, %s363, [#allocation4]
    $region53: #{tpu_custom_call.1} parent=1 // pred_fallthru
      _
    // Predicated region
    $region54: #{tpu_custom_call.1} parent=1 // pred_check
      _
    $region55: #{tpu_custom_call.1} parent=1 // pred_check_branch
      %367 = sbr.rel (0) target = $region57
    $region56: #{tpu_custom_call.1} parent=1 // pred_region
      %369 = vsyncadd [#allocation15], 0
      %s371 = sshll.u32 [#allocation14], 4
      %s372 = int_to_ptr.vmem [resolvable:$true] %s371
      %s373 = sshll.u32 %s7, 4
      %s374 = int_to_ptr.hbm [resolvable:$true] %s373
      %376 = dma.vmem_to_hbm [thread:$0]  %s372, 32, %s374, [#allocation15]
    $region57: #{tpu_custom_call.1} parent=1 // pred_fallthru
      _
    // Predicated region
    $region58: #{tpu_custom_call.1} parent=1 // pred_check
      _
    $region59: #{tpu_custom_call.1} parent=1 // pred_check_branch
      %378 = sbr.rel (0) target = $region61
    $region60: #{tpu_custom_call.1} parent=1 // pred_region
      %380 = dma.done [#allocation4], 32
    $region61: #{tpu_custom_call.1} parent=1 // pred_fallthru
      _
    // Predicated region
    $region62: #{tpu_custom_call.1} parent=1 // pred_check
      _
    $region63: #{tpu_custom_call.1} parent=1 // pred_check_branch
      %382 = sbr.rel (0) target = $region65
    $region64: #{tpu_custom_call.1} parent=1 // pred_region
      %384 = dma.done [#allocation15], 32
    $region65: #{tpu_custom_call.1} parent=1 // pred_fallthru
      _
    %385 = vsyncpa [#allocation3], 1
    %386 = vsyncpa [#allocation6], 1
    %387 = vsyncpa [#allocation9], 1
    %388 = vsyncpa [#allocation12], 1
    %389 = vsyncpa [#allocation4], 1
    %390 = vsyncpa [#allocation15], 1

</llo_original>
